<compile_context>
chip_gen: v7x
topology: tpu7x:2x2x1
jax: 0.10.0
libtpu: 0.0.40
codegen_flags: <defaults>
</compile_context>

<pallas_src>
from functools import partial

import jax
import jax.numpy as jnp
from jax.experimental import pallas as pl
from jax.experimental.pallas import tpu as pltpu

# Explicit scoped-VMEM limit: well above the <= ~8 MiB working set of a
# 512 KiB block (inputs/outputs double-buffered + in-kernel temporaries) and
# safely below v7x's 64 MiB physical VMEM; also lifts v5e's 16 MiB default.
_VMEM_LIMIT_BYTES = 32 * 1024 * 1024
_MAX_BLOCK_BYTES = 512 * 1024  # cap for one (c_blk, H, W) block of x


def _offsets(k, dilation):
    pad = dilation * (k - 1) // 2
    return [j * dilation - pad for j in range(k)]


def _wshift_reflect(x, o):
    """y[..., h, w] = x[..., h, reflect(w + o)]  (ReflectionPad2d semantics)."""
    if o == 0:
        return x
    w = x.shape[-1]
    if o > 0:
        parts = [x[..., o:]]
        for j in range(o, 0, -1):          # columns w = W-o .. W-1
            c = w - 2 + j - o
            parts.append(x[..., c:c + 1])
    else:
        oo = -o
        parts = []
        for j in range(1, oo + 1):         # columns w = 0 .. -o-1
            c = oo - j + 1
            parts.append(x[..., c:c + 1])
        parts.append(x[..., :w - oo])
    return jnp.concatenate(parts, axis=-1)


def _hshift_reflect(x, o):
    """y[..., h, w] = x[..., reflect(h + o), w]."""
    if o == 0:
        return x
    h = x.shape[-2]
    if o > 0:
        parts = [x[..., o:, :]]
        for j in range(o, 0, -1):          # rows h = H-o .. H-1
            r = h - 2 + j - o
            parts.append(x[..., r:r + 1, :])
    else:
        oo = -o
        parts = []
        for j in range(1, oo + 1):         # rows h = 0 .. -o-1
            r = oo - j + 1
            parts.append(x[..., r:r + 1, :])
        parts.append(x[..., :h - oo, :])
    return jnp.concatenate(parts, axis=-2)


# --------------------------- pass 1: pooling stats ---------------------------
def _stats_kernel(x_ref, s_ref, *, k, dilation):
    """Per-(n,c): [mean(x), mean(Wshift_reflect(x, o_j)) for each tap j]."""
    x = x_ref[0].astype(jnp.float32)                     # (c_blk, H, W)
    colm = jnp.mean(x, axis=-2, keepdims=True)           # (c_blk, 1, W)
    ms = [jnp.mean(colm, axis=-1, keepdims=True)]        # mean(x)
    for o in _offsets(k, dilation):
        # the W-shift commutes with the mean over H -> shift the column means
        ms.append(jnp.mean(_wshift_reflect(colm, o), axis=-1, keepdims=True))
    s_ref[0] = jnp.concatenate(ms, axis=-1).astype(s_ref.dtype)   # (c_blk,1,k+1)


# ------------- pass 2: fused strip-H recompute + strip-V + square ------------
def _fused_kernel(x_ref, coef_ref, o_ref, *, k, dilation):
    f32 = jnp.float32
    x = x_ref[0].astype(f32)                             # (c_blk, H, W)
    coef = coef_ref[0].astype(f32)                       # (c_blk, 1, M)

    def cf(m):                                           # (c_blk, 1, 1)
        return coef[:, :, m:m + 1]

    offs = _offsets(k, dilation)
    t_h0, t_v0, t_s0 = 0, k, 2 * k
    base = 2 * k + k * k
    i_a1, i_b1, i_c1 = base, base + 1, base + 2
    i_ca2, i_cb2, i_cc2 = base + 3, base + 4, base + 5
    i_cas, i_cx, i_dsq = base + 6, base + 7, base + 8

    # column-shifted slabs of x, shared by the strip-H and the square branch
    cs = [_wshift_reflect(x, o) for o in offs]

    # ---- horizontal strip attention (y1 recomputed, never stored to HBM) ----
    conv_h = cf(t_h0) * cs[0]
    for j in range(1, k):
        conv_h = conv_h + cf(t_h0 + j) * cs[j]
    gap_w = jnp.mean(x, axis=-1, keepdims=True)          # (c_blk, H, 1)
    y1 = cf(i_a1) * conv_h - cf(i_b1) * gap_w + cf(i_c1) * x

    # ---- vertical strip attention on y1 ----
    conv_v = None
    for i in range(k):
        term = cf(t_v0 + i) * _hshift_reflect(y1, offs[i])
        conv_v = term if conv_v is None else conv_v + term
    gap_h = jnp.mean(y1, axis=-2, keepdims=True)         # (c_blk, 1, W)
    strip = cf(i_ca2) * conv_v - cf(i_cb2) * gap_h + cf(i_cc2) * y1

    # ---- k x k dynamic (square) filter: only k row shifts via linearity ----
    conv_s = None
    for i in range(k):
        a_i = cf(t_s0 + i * k) * cs[0]
        for j in range(1, k):
            a_i = a_i + cf(t_s0 + i * k + j) * cs[j]
        a_i = _hshift_reflect(a_i, offs[i])
        conv_s = a_i if conv_s is None else conv_s + a_i

    out = strip + cf(i_cas) * conv_s - cf(i_dsq) + cf(i_cx) * x
    o_ref[0] = out.astype(o_ref.dtype)


# --------------------------------- wrapper -----------------------------------
def _pick_c_blk(C, N, Hh, Ww):
    """Largest divisor of C fitting the byte cap, with a balanced grid."""
    divisors = [d for d in range(1, C + 1) if C % d == 0]
    bytes_per_chan = Hh * Ww * 4
    fitting = [d for d in divisors if d * bytes_per_chan <= _MAX_BLOCK_BYTES]
    c_blk = max(fitting) if fitting else 1
    # keep >= 8 grid steps and an even total so both v7x TensorCores get
    # balanced work (harmless on single-core v5e/v6e).
    while c_blk > 1:
        steps = N * (C // c_blk)
        if steps >= 8 and steps % 2 == 0:
            break
        smaller = [d for d in divisors if d < c_blk]
        if not smaller:
            break
        c_blk = max(smaller)
    return c_blk


def ms_attention(x, params, *, kernel=3, dilation=1, group=8):
    """Forward pass of MSAttention (cubic strip attention + dynamic filter)."""
    N, C, Hh, Ww = x.shape
    assert C % group == 0, "dim must be divisible by group"
    cpg = C // group
    k = kernel
    pad = dilation * (k - 1) // 2
    assert pad < Hh and pad < Ww, "reflection pad must be smaller than spatial size"

    f32 = jnp.float32
    io_dtype = x.dtype
    c_blk = _pick_c_blk(C, N, Hh, Ww)
    grid = (N, C // c_blk)
    blk4 = lambda n, cb: (n, cb, 0, 0)

    # ----------------------- pass 1: pooling statistics ----------------------
    stats = pl.pallas_call(
        partial(_stats_kernel, k=k, dilation=dilation),
        out_shape=jax.ShapeDtypeStruct((N, C, 1, k + 1), f32),
        grid_spec=pltpu.PrefetchScalarGridSpec(
            num_scalar_prefetch=0,
            grid=grid,
            in_specs=[pl.BlockSpec((1, c_blk, Hh, Ww), blk4)],
            out_specs=pl.BlockSpec((1, c_blk, 1, k + 1), blk4),
        ),
        compiler_params=pltpu.CompilerParams(
            dimension_semantics=("parallel", "parallel"),
            vmem_limit_bytes=_VMEM_LIMIT_BYTES),
    )(x)

    stats = stats.reshape(N, C, k + 1).astype(f32)
    pooled_x = stats[:, :, 0]                                      # (N, C)
    m_conv = stats[:, :, 1:]                                       # (N, C, k)

    # ------------------ glue: taps & fused per-channel constants -------------
    tap_h = jnp.repeat(
        jnp.tanh(pooled_x @ params["conv_w_h"].T.astype(f32)).reshape(N, group, k),
        cpg, axis=1)                                               # (N, C, k)

    a1 = ((params["inside_h"] + 1.0) * params["lamb_l_h"]).astype(f32)   # (C,)
    b1 = (params["inside_h"] * params["lamb_l_h"]).astype(f32)
    c1 = (params["lamb_h_h"] + 1.0).astype(f32)

    # analytic global mean of y1 (no y1 tensor needed):
    # mean(y1) = a1*sum_j tap_h_j*mean(shift_j(x)) + (c1 - b1)*mean(x)
    pooled_y1 = (a1[None, :] * jnp.sum(tap_h * m_conv, axis=-1)
                 + (c1 - b1)[None, :] * pooled_x)                  # (N, C)

    tap_v = jnp.repeat(
        jnp.tanh(pooled_y1 @ params["conv_w_w"].T.astype(f32)).reshape(N, group, k),
        cpg, axis=1)                                               # (N, C, k)

    lf = pooled_x @ params["conv_w_sq"].T.astype(f32)
    scale = params["bn_w"] / jnp.sqrt(params["bn_rv"] + params["bn_eps"])
    lf = (lf - params["bn_rm"]) * scale + params["bn_b"]
    tap_s = jnp.repeat(jnp.tanh(lf).reshape(N, group, k * k), cpg, axis=1)

    a2 = (params["inside_w"] + 1.0) * params["lamb_l_w"]
    b2 = params["inside_w"] * params["lamb_l_w"]
    c2 = params["lamb_h_w"] + 1.0
    a_s = (params["inside_sq"] + 1.0) * params["lamb_l_sq"]
    b_s = params["inside_sq"] * params["lamb_l_sq"]
    c_s = params["lamb_h_sq"] + 1.0
    gamma, beta = params["gamma"], params["beta"]

    def bc(v):  # (C,) -> (N, C, 1), f32
        return jnp.broadcast_to(jnp.asarray(v, f32).reshape(-1)[None, :],
                                (N, C))[..., None]

    coef = jnp.concatenate(
        [tap_h.astype(f32), tap_v.astype(f32), tap_s.astype(f32),
         bc(a1), bc(b1), bc(c1),
         bc(gamma * a2), bc(gamma * b2), bc(gamma * c2),
         bc(a_s), bc(beta + c_s),
         (jnp.asarray(b_s, f32)[None, :] * pooled_x)[..., None]],
        axis=-1).astype(f32)                                       # (N, C, M)
    M = coef.shape[-1]
    coef = coef.reshape(N, C, 1, M)

    # -------------------------- pass 2: fused output --------------------------
    out = pl.pallas_call(
        partial(_fused_kernel, k=k, dilation=dilation),
        out_shape=jax.ShapeDtypeStruct((N, C, Hh, Ww), io_dtype),
        grid_spec=pltpu.PrefetchScalarGridSpec(
            num_scalar_prefetch=0,
            grid=grid,
            in_specs=[
                pl.BlockSpec((1, c_blk, Hh, Ww), blk4),            # x
                pl.BlockSpec((1, c_blk, 1, M), blk4),              # coef bundle
            ],
            out_specs=pl.BlockSpec((1, c_blk, Hh, Ww), blk4),
        ),
        compiler_params=pltpu.CompilerParams(
            dimension_semantics=("parallel", "parallel"),
            vmem_limit_bytes=_VMEM_LIMIT_BYTES),
    )(x, coef)
    return out


# ------------------------- pure-JAX reference (spec mirror) -----------------
def _strip_att_ref(x, conv_w, inside_all, lamb_l, lamb_h,
                   *, kernel, dilation, group, H):
    N, C, Hh, Ww = x.shape
    pad = dilation * (kernel - 1) // 2
    cpg = C // group
    pooled = jnp.mean(x, axis=(2, 3))
    taps = jnp.tanh(pooled @ conv_w.T).reshape(N, group, kernel)
    if H:
        xp = jnp.pad(x, ((0, 0), (0, 0), (0, 0), (pad, pad)), mode="reflect")
        gap = jnp.mean(x, axis=3, keepdims=True)
    else:
        xp = jnp.pad(x, ((0, 0), (0, 0), (pad, pad), (0, 0)), mode="reflect")
        gap = jnp.mean(x, axis=2, keepdims=True)
    out = jnp.zeros_like(x)
    for kk in range(kernel):
        if H:
            patch = xp[:, :, :, kk * dilation: kk * dilation + Ww]
        else:
            patch = xp[:, :, kk * dilation: kk * dilation + Hh, :]
        fk = jnp.repeat(taps[:, :, kk], cpg, axis=1)[:, :, None, None]
        out = out + patch * fk
    ia = inside_all[None, :, None, None]
    out_low = (out * (ia + 1.0) - ia * gap) * lamb_l[None, :, None, None]
    out_high = x * (lamb_h[None, :, None, None] + 1.0)
    return out_low + out_high


def _dynamic_filter_ref(x, conv_w, bn_w, bn_b, bn_rm, bn_rv, bn_eps,
                        inside_all, lamb_l, lamb_h, *, kernel, dilation, group):
    N, C, Hh, Ww = x.shape
    pad = dilation * (kernel - 1) // 2
    cpg = C // group
    pooled = jnp.mean(x, axis=(2, 3))
    lf = pooled @ conv_w.T
    lf = (lf - bn_rm) / jnp.sqrt(bn_rv + bn_eps) * bn_w + bn_b
    taps = jnp.tanh(lf).reshape(N, group, kernel * kernel)
    xp = jnp.pad(x, ((0, 0), (0, 0), (pad, pad), (pad, pad)), mode="reflect")
    out = jnp.zeros_like(x)
    for ki in range(kernel):
        for kj in range(kernel):
            patch = xp[:, :, ki * dilation: ki * dilation + Hh,
                       kj * dilation: kj * dilation + Ww]
            fk = jnp.repeat(taps[:, :, ki * kernel + kj], cpg, axis=1)[:, :, None, None]
            out = out + patch * fk
    gap = jnp.mean(x, axis=(2, 3), keepdims=True)
    ia = inside_all[None, :, None, None]
    out_low = (out * (ia + 1.0) - ia * gap) * lamb_l[None, :, None, None]
    out_high = x * (lamb_h[None, :, None, None] + 1.0)
    return out_low + out_high


def _ms_attention_ref(x, p, *, kernel, dilation, group):
    y1 = _strip_att_ref(x, p["conv_w_h"], p["inside_h"], p["lamb_l_h"], p["lamb_h_h"],
                        kernel=kernel, dilation=dilation, group=group, H=True)
    y2 = _strip_att_ref(y1, p["conv_w_w"], p["inside_w"], p["lamb_l_w"], p["lamb_h_w"],
                        kernel=kernel, dilation=dilation, group=group, H=False)
    strip = p["gamma"][None, :, None, None] * y2 + p["beta"][None, :, None, None] * x
    square = _dynamic_filter_ref(x, p["conv_w_sq"], p["bn_w"], p["bn_b"], p["bn_rm"],
                                 p["bn_rv"], p["bn_eps"], p["inside_sq"],
                                 p["lamb_l_sq"], p["lamb_h_sq"],
                                 kernel=kernel, dilation=dilation, group=group)
    return strip + square


if __name__ == "__main__":
    # MSAttention(dim=8, kernel_size=3, dilation=1, group=2)
    dim, kernel, dilation, group = 8, 3, 1, 2
    N, Hh, Ww = 2, 16, 16

    key = jax.random.PRNGKey(0)
    keys = jax.random.split(key, 19)

    def nrm(kk, shape, scale=1.0):
        return scale * jax.random.normal(kk, shape, dtype=jnp.float32)

    x = nrm(keys[0], (N, dim, Hh, Ww))

    # Torch inits inside_all/lamb_l/lamb_h/gamma to zero and beta to one
    # (degenerate); use small nonzero values to exercise every path.
    params = {
        # cubic_attention.H_spatial_att
        "conv_w_h": nrm(keys[1], (group * kernel, dim), 0.3),
        "inside_h": nrm(keys[2], (dim,), 0.2),
        "lamb_l_h": nrm(keys[3], (dim,), 0.2),
        "lamb_h_h": nrm(keys[4], (dim,), 0.2),
        # cubic_attention.W_spatial_att
        "conv_w_w": nrm(keys[5], (group * kernel, dim), 0.3),
        "inside_w": nrm(keys[6], (dim,), 0.2),
        "lamb_l_w": nrm(keys[7], (dim,), 0.2),
        "lamb_h_w": nrm(keys[8], (dim,), 0.2),
        # cubic_attention mixing
        "gamma": nrm(keys[9], (dim,), 0.5),
        "beta": 1.0 + nrm(keys[10], (dim,), 0.1),
        # dynamic_filter (square branch)
        "conv_w_sq": nrm(keys[11], (group * kernel * kernel, dim), 0.3),
        "bn_w": 1.0 + nrm(keys[12], (group * kernel * kernel,), 0.1),
        "bn_b": nrm(keys[13], (group * kernel * kernel,), 0.1),
        "bn_rm": nrm(keys[14], (group * kernel * kernel,), 0.1),
        "bn_rv": 1.0 + 0.1 * jnp.abs(nrm(keys[15], (group * kernel * kernel,))),
        "bn_eps": 1e-5,
        "inside_sq": nrm(keys[16], (dim,), 0.2),
        "lamb_l_sq": nrm(keys[17], (dim,), 0.2),
        "lamb_h_sq": nrm(keys[18], (dim,), 0.2),
    }

    fwd = jax.jit(partial(ms_attention, kernel=kernel, dilation=dilation, group=group))
    out = fwd(x, params)
    out = jax.block_until_ready(out)

    ref = _ms_attention_ref(x, params, kernel=kernel, dilation=dilation, group=group)
    assert out.shape == (N, dim, Hh, Ww)
    max_err = float(jnp.max(jnp.abs(out - ref)))
    assert max_err < 2e-4, max_err

    print("KERNEL_OK")
</pallas_src>

<mosaic_0001>
module attributes {stable_mosaic.version = 11 : i64} {
  func.func @_stats_kernel(%arg0: i32, %arg1: i32, %arg2: memref<1x2x16x16xf32, #tpu.memory_space<vmem>>, %arg3: memref<1x2x1x4xf32, #tpu.memory_space<vmem>>) attributes {dimension_semantics = [#tpu.dimension_semantics<parallel>, #tpu.dimension_semantics<parallel>], iteration_bounds = array<i64: 2, 4>, scalar_prefetch = 0 : i64, scratch_operands = 0 : i64, tpu.core_type = #tpu.core_type<tc>, window_params = [{transform_indices = @transform_0, window_bounds = array<i64: 1, 2, 16, 16>}, {transform_indices = @transform_1, window_bounds = array<i64: 1, 2, 1, 4>}]} {
    %c0 = arith.constant 0 : index
    %c0_0 = arith.constant 0 : index
    %c0_1 = arith.constant 0 : index
    %c0_2 = arith.constant 0 : index
    %0 = vector.load %arg2[%c0, %c0_0, %c0_1, %c0_2] : memref<1x2x16x16xf32, #tpu.memory_space<vmem>>, vector<1x2x16x16xf32>
    %1 = vector.shape_cast %0 : vector<1x2x16x16xf32> to vector<2x16x16xf32>
    %cst = arith.constant dense<0.000000e+00> : vector<2x16xf32>
    %2 = vector.multi_reduction <add>, %1, %cst [1] : vector<2x16x16xf32> to vector<2x16xf32>
    %3 = vector.shape_cast %2 : vector<2x16xf32> to vector<2x1x16xf32>
    %cst_3 = arith.constant 1.600000e+01 : f32
    %4 = vector.broadcast %cst_3 : f32 to vector<2x1x16xf32>
    %5 = arith.divf %3, %4 : vector<2x1x16xf32>
    %cst_4 = arith.constant dense<0.000000e+00> : vector<2x1xf32>
    %6 = vector.multi_reduction <add>, %5, %cst_4 [2] : vector<2x1x16xf32> to vector<2x1xf32>
    %7 = vector.shape_cast %6 : vector<2x1xf32> to vector<2x1x1xf32>
    %cst_5 = arith.constant 1.600000e+01 : f32
    %8 = vector.broadcast %cst_5 : f32 to vector<2x1x1xf32>
    %9 = arith.divf %7, %8 : vector<2x1x1xf32>
    %10 = vector.extract_strided_slice %5 {offsets = [0, 0, 1], sizes = [2, 1, 1], strides = [1, 1, 1]} : vector<2x1x16xf32> to vector<2x1x1xf32>
    %11 = vector.extract_strided_slice %5 {offsets = [0, 0, 0], sizes = [2, 1, 15], strides = [1, 1, 1]} : vector<2x1x16xf32> to vector<2x1x15xf32>
    %12 = tpu.concatenate %10, %11 in 2 : vector<2x1x1xf32>, vector<2x1x15xf32> -> vector<2x1x16xf32>
    %cst_6 = arith.constant dense<0.000000e+00> : vector<2x1xf32>
    %13 = vector.multi_reduction <add>, %12, %cst_6 [2] : vector<2x1x16xf32> to vector<2x1xf32>
    %14 = vector.shape_cast %13 : vector<2x1xf32> to vector<2x1x1xf32>
    %cst_7 = arith.constant 1.600000e+01 : f32
    %15 = vector.broadcast %cst_7 : f32 to vector<2x1x1xf32>
    %16 = arith.divf %14, %15 : vector<2x1x1xf32>
    %cst_8 = arith.constant dense<0.000000e+00> : vector<2x1xf32>
    %17 = vector.multi_reduction <add>, %5, %cst_8 [2] : vector<2x1x16xf32> to vector<2x1xf32>
    %18 = vector.shape_cast %17 : vector<2x1xf32> to vector<2x1x1xf32>
    %cst_9 = arith.constant 1.600000e+01 : f32
    %19 = vector.broadcast %cst_9 : f32 to vector<2x1x1xf32>
    %20 = arith.divf %18, %19 : vector<2x1x1xf32>
    %21 = vector.extract_strided_slice %5 {offsets = [0, 0, 1], sizes = [2, 1, 15], strides = [1, 1, 1]} : vector<2x1x16xf32> to vector<2x1x15xf32>
    %22 = vector.extract_strided_slice %5 {offsets = [0, 0, 14], sizes = [2, 1, 1], strides = [1, 1, 1]} : vector<2x1x16xf32> to vector<2x1x1xf32>
    %23 = tpu.concatenate %21, %22 in 2 : vector<2x1x15xf32>, vector<2x1x1xf32> -> vector<2x1x16xf32>
    %cst_10 = arith.constant dense<0.000000e+00> : vector<2x1xf32>
    %24 = vector.multi_reduction <add>, %23, %cst_10 [2] : vector<2x1x16xf32> to vector<2x1xf32>
    %25 = vector.shape_cast %24 : vector<2x1xf32> to vector<2x1x1xf32>
    %cst_11 = arith.constant 1.600000e+01 : f32
    %26 = vector.broadcast %cst_11 : f32 to vector<2x1x1xf32>
    %27 = arith.divf %25, %26 : vector<2x1x1xf32>
    %28 = tpu.concatenate %9, %16, %20, %27 in 2 : vector<2x1x1xf32>, vector<2x1x1xf32>, vector<2x1x1xf32>, vector<2x1x1xf32> -> vector<2x1x4xf32>
    %c0_12 = arith.constant 0 : index
    %c0_13 = arith.constant 0 : index
    %c0_14 = arith.constant 0 : index
    %c0_15 = arith.constant 0 : index
    %29 = vector.load %arg3[%c0_12, %c0_13, %c0_14, %c0_15] : memref<1x2x1x4xf32, #tpu.memory_space<vmem>>, vector<1x2x1x4xf32>
    %30 = vector.shape_cast %29 : vector<1x2x1x4xf32> to vector<2x1x4xf32>
    %31 = vector.shape_cast %28 : vector<2x1x4xf32> to vector<1x2x1x4xf32>
    tpu.vector_store %arg3[%c0_12, %c0_13, %c0_14, %c0_15], %31 {strides = array<i32>} : memref<1x2x1x4xf32, #tpu.memory_space<vmem>>, vector<1x2x1x4xf32>,
    return
  }
  func.func @transform_0(%arg0: i32, %arg1: i32) -> (i32, i32, i32, i32) {
    %c0_i32 = arith.constant 0 : i32
    %c0_i32_0 = arith.constant 0 : i32
    %c0_i32_1 = arith.constant 0 : i32
    return %arg0, %arg1, %c0_i32, %c0_i32_0 : i32, i32, i32, i32
  }
  func.func @transform_1(%arg0: i32, %arg1: i32) -> (i32, i32, i32, i32) {
    %c0_i32 = arith.constant 0 : i32
    %c0_i32_0 = arith.constant 0 : i32
    %c0_i32_1 = arith.constant 0 : i32
    return %arg0, %arg1, %c0_i32, %c0_i32_0 : i32, i32, i32, i32
  }
}

module attributes {stable_mosaic.version = 11 : i64} {
  func.func @_fused_kernel(%arg0: i32, %arg1: i32, %arg2: memref<1x2x16x16xf32, #tpu.memory_space<vmem>>, %arg3: memref<1x2x1x24xf32, #tpu.memory_space<vmem>>, %arg4: memref<1x2x16x16xf32, #tpu.memory_space<vmem>>) attributes {dimension_semantics = [#tpu.dimension_semantics<parallel>, #tpu.dimension_semantics<parallel>], iteration_bounds = array<i64: 2, 4>, scalar_prefetch = 0 : i64, scratch_operands = 0 : i64, tpu.core_type = #tpu.core_type<tc>, window_params = [{transform_indices = @transform_0, window_bounds = array<i64: 1, 2, 16, 16>}, {transform_indices = @transform_1, window_bounds = array<i64: 1, 2, 1, 24>}, {transform_indices = @transform_2, window_bounds = array<i64: 1, 2, 16, 16>}]} {
    %c0 = arith.constant 0 : index
    %c0_0 = arith.constant 0 : index
    %c0_1 = arith.constant 0 : index
    %c0_2 = arith.constant 0 : index
    %0 = vector.load %arg2[%c0, %c0_0, %c0_1, %c0_2] : memref<1x2x16x16xf32, #tpu.memory_space<vmem>>, vector<1x2x16x16xf32>
    %1 = vector.shape_cast %0 : vector<1x2x16x16xf32> to vector<2x16x16xf32>
    %c0_3 = arith.constant 0 : index
    %c0_4 = arith.constant 0 : index
    %c0_5 = arith.constant 0 : index
    %c0_6 = arith.constant 0 : index
    %2 = vector.load %arg3[%c0_3, %c0_4, %c0_5, %c0_6] : memref<1x2x1x24xf32, #tpu.memory_space<vmem>>, vector<1x2x1x24xf32>
    %3 = vector.shape_cast %2 : vector<1x2x1x24xf32> to vector<2x1x24xf32>
    %4 = vector.extract_strided_slice %1 {offsets = [0, 0, 1], sizes = [2, 16, 1], strides = [1, 1, 1]} : vector<2x16x16xf32> to vector<2x16x1xf32>
    %5 = vector.extract_strided_slice %1 {offsets = [0, 0, 0], sizes = [2, 16, 15], strides = [1, 1, 1]} : vector<2x16x16xf32> to vector<2x16x15xf32>
    %6 = tpu.concatenate %4, %5 in 2 : vector<2x16x1xf32>, vector<2x16x15xf32> -> vector<2x16x16xf32>
    %7 = vector.extract_strided_slice %1 {offsets = [0, 0, 1], sizes = [2, 16, 15], strides = [1, 1, 1]} : vector<2x16x16xf32> to vector<2x16x15xf32>
    %8 = vector.extract_strided_slice %1 {offsets = [0, 0, 14], sizes = [2, 16, 1], strides = [1, 1, 1]} : vector<2x16x16xf32> to vector<2x16x1xf32>
    %9 = tpu.concatenate %7, %8 in 2 : vector<2x16x15xf32>, vector<2x16x1xf32> -> vector<2x16x16xf32>
    %10 = vector.extract_strided_slice %3 {offsets = [0, 0, 0], sizes = [2, 1, 1], strides = [1, 1, 1]} : vector<2x1x24xf32> to vector<2x1x1xf32>
    %11 = vector.broadcast %10 : vector<2x1x1xf32> to vector<2x16x16xf32>
    %12 = arith.mulf %11, %6 : vector<2x16x16xf32>
    %13 = vector.extract_strided_slice %3 {offsets = [0, 0, 1], sizes = [2, 1, 1], strides = [1, 1, 1]} : vector<2x1x24xf32> to vector<2x1x1xf32>
    %14 = vector.broadcast %13 : vector<2x1x1xf32> to vector<2x16x16xf32>
    %15 = arith.mulf %14, %1 : vector<2x16x16xf32>
    %16 = arith.addf %12, %15 : vector<2x16x16xf32>
    %17 = vector.extract_strided_slice %3 {offsets = [0, 0, 2], sizes = [2, 1, 1], strides = [1, 1, 1]} : vector<2x1x24xf32> to vector<2x1x1xf32>
    %18 = vector.broadcast %17 : vector<2x1x1xf32> to vector<2x16x16xf32>
    %19 = arith.mulf %18, %9 : vector<2x16x16xf32>
    %20 = arith.addf %16, %19 : vector<2x16x16xf32>
    %cst = arith.constant dense<0.000000e+00> : vector<2x16xf32>
    %21 = vector.multi_reduction <add>, %1, %cst [2] : vector<2x16x16xf32> to vector<2x16xf32>
    %22 = vector.shape_cast %21 : vector<2x16xf32> to vector<2x16x1xf32>
    %cst_7 = arith.constant 1.600000e+01 : f32
    %23 = vector.broadcast %cst_7 : f32 to vector<2x16x1xf32>
    %24 = arith.divf %22, %23 : vector<2x16x1xf32>
    %25 = vector.extract_strided_slice %3 {offsets = [0, 0, 15], sizes = [2, 1, 1], strides = [1, 1, 1]} : vector<2x1x24xf32> to vector<2x1x1xf32>
    %26 = vector.broadcast %25 : vector<2x1x1xf32> to vector<2x16x16xf32>
    %27 = arith.mulf %26, %20 : vector<2x16x16xf32>
    %28 = vector.extract_strided_slice %3 {offsets = [0, 0, 16], sizes = [2, 1, 1], strides = [1, 1, 1]} : vector<2x1x24xf32> to vector<2x1x1xf32>
    %29 = vector.broadcast %28 : vector<2x1x1xf32> to vector<2x16x1xf32>
    %30 = arith.mulf %29, %24 : vector<2x16x1xf32>
    %31 = vector.broadcast %30 : vector<2x16x1xf32> to vector<2x16x16xf32>
    %32 = arith.subf %27, %31 : vector<2x16x16xf32>
    %33 = vector.extract_strided_slice %3 {offsets = [0, 0, 17], sizes = [2, 1, 1], strides = [1, 1, 1]} : vector<2x1x24xf32> to vector<2x1x1xf32>
    %34 = vector.broadcast %33 : vector<2x1x1xf32> to vector<2x16x16xf32>
    %35 = arith.mulf %34, %1 : vector<2x16x16xf32>
    %36 = arith.addf %32, %35 : vector<2x16x16xf32>
    %37 = vector.extract_strided_slice %3 {offsets = [0, 0, 3], sizes = [2, 1, 1], strides = [1, 1, 1]} : vector<2x1x24xf32> to vector<2x1x1xf32>
    %38 = vector.extract_strided_slice %36 {offsets = [0, 1, 0], sizes = [2, 1, 16], strides = [1, 1, 1]} : vector<2x16x16xf32> to vector<2x1x16xf32>
    %39 = vector.extract_strided_slice %36 {offsets = [0, 0, 0], sizes = [2, 15, 16], strides = [1, 1, 1]} : vector<2x16x16xf32> to vector<2x15x16xf32>
    %40 = tpu.concatenate %38, %39 in 1 : vector<2x1x16xf32>, vector<2x15x16xf32> -> vector<2x16x16xf32>
    %41 = vector.broadcast %37 : vector<2x1x1xf32> to vector<2x16x16xf32>
    %42 = arith.mulf %41, %40 : vector<2x16x16xf32>
    %43 = vector.extract_strided_slice %3 {offsets = [0, 0, 4], sizes = [2, 1, 1], strides = [1, 1, 1]} : vector<2x1x24xf32> to vector<2x1x1xf32>
    %44 = vector.broadcast %43 : vector<2x1x1xf32> to vector<2x16x16xf32>
    %45 = arith.mulf %44, %36 : vector<2x16x16xf32>
    %46 = arith.addf %42, %45 : vector<2x16x16xf32>
    %47 = vector.extract_strided_slice %3 {offsets = [0, 0, 5], sizes = [2, 1, 1], strides = [1, 1, 1]} : vector<2x1x24xf32> to vector<2x1x1xf32>
    %48 = vector.extract_strided_slice %36 {offsets = [0, 1, 0], sizes = [2, 15, 16], strides = [1, 1, 1]} : vector<2x16x16xf32> to vector<2x15x16xf32>
    %49 = vector.extract_strided_slice %36 {offsets = [0, 14, 0], sizes = [2, 1, 16], strides = [1, 1, 1]} : vector<2x16x16xf32> to vector<2x1x16xf32>
    %50 = tpu.concatenate %48, %49 in 1 : vector<2x15x16xf32>, vector<2x1x16xf32> -> vector<2x16x16xf32>
    %51 = vector.broadcast %47 : vector<2x1x1xf32> to vector<2x16x16xf32>
    %52 = arith.mulf %51, %50 : vector<2x16x16xf32>
    %53 = arith.addf %46, %52 : vector<2x16x16xf32>
    %cst_8 = arith.constant dense<0.000000e+00> : vector<2x16xf32>
    %54 = vector.multi_reduction <add>, %36, %cst_8 [1] : vector<2x16x16xf32> to vector<2x16xf32>
    %55 = vector.shape_cast %54 : vector<2x16xf32> to vector<2x1x16xf32>
    %cst_9 = arith.constant 1.600000e+01 : f32
    %56 = vector.broadcast %cst_9 : f32 to vector<2x1x16xf32>
    %57 = arith.divf %55, %56 : vector<2x1x16xf32>
    %58 = vector.extract_strided_slice %3 {offsets = [0, 0, 18], sizes = [2, 1, 1], strides = [1, 1, 1]} : vector<2x1x24xf32> to vector<2x1x1xf32>
    %59 = vector.broadcast %58 : vector<2x1x1xf32> to vector<2x16x16xf32>
    %60 = arith.mulf %59, %53 : vector<2x16x16xf32>
    %61 = vector.extract_strided_slice %3 {offsets = [0, 0, 19], sizes = [2, 1, 1], strides = [1, 1, 1]} : vector<2x1x24xf32> to vector<2x1x1xf32>
    %62 = vector.broadcast %61 : vector<2x1x1xf32> to vector<2x1x16xf32>
    %63 = arith.mulf %62, %57 : vector<2x1x16xf32>
    %64 = vector.broadcast %63 : vector<2x1x16xf32> to vector<2x16x16xf32>
    %65 = arith.subf %60, %64 : vector<2x16x16xf32>
    %66 = vector.extract_strided_slice %3 {offsets = [0, 0, 20], sizes = [2, 1, 1], strides = [1, 1, 1]} : vector<2x1x24xf32> to vector<2x1x1xf32>
    %67 = vector.broadcast %66 : vector<2x1x1xf32> to vector<2x16x16xf32>
    %68 = arith.mulf %67, %36 : vector<2x16x16xf32>
    %69 = arith.addf %65, %68 : vector<2x16x16xf32>
    %70 = vector.extract_strided_slice %3 {offsets = [0, 0, 6], sizes = [2, 1, 1], strides = [1, 1, 1]} : vector<2x1x24xf32> to vector<2x1x1xf32>
    %71 = vector.broadcast %70 : vector<2x1x1xf32> to vector<2x16x16xf32>
    %72 = arith.mulf %71, %6 : vector<2x16x16xf32>
    %73 = vector.extract_strided_slice %3 {offsets = [0, 0, 7], sizes = [2, 1, 1], strides = [1, 1, 1]} : vector<2x1x24xf32> to vector<2x1x1xf32>
    %74 = vector.broadcast %73 : vector<2x1x1xf32> to vector<2x16x16xf32>
    %75 = arith.mulf %74, %1 : vector<2x16x16xf32>
    %76 = arith.addf %72, %75 : vector<2x16x16xf32>
    %77 = vector.extract_strided_slice %3 {offsets = [0, 0, 8], sizes = [2, 1, 1], strides = [1, 1, 1]} : vector<2x1x24xf32> to vector<2x1x1xf32>
    %78 = vector.broadcast %77 : vector<2x1x1xf32> to vector<2x16x16xf32>
    %79 = arith.mulf %78, %9 : vector<2x16x16xf32>
    %80 = arith.addf %76, %79 : vector<2x16x16xf32>
    %81 = vector.extract_strided_slice %80 {offsets = [0, 1, 0], sizes = [2, 1, 16], strides = [1, 1, 1]} : vector<2x16x16xf32> to vector<2x1x16xf32>
    %82 = vector.extract_strided_slice %80 {offsets = [0, 0, 0], sizes = [2, 15, 16], strides = [1, 1, 1]} : vector<2x16x16xf32> to vector<2x15x16xf32>
    %83 = tpu.concatenate %81, %82 in 1 : vector<2x1x16xf32>, vector<2x15x16xf32> -> vector<2x16x16xf32>
    %84 = vector.extract_strided_slice %3 {offsets = [0, 0, 9], sizes = [2, 1, 1], strides = [1, 1, 1]} : vector<2x1x24xf32> to vector<2x1x1xf32>
    %85 = vector.broadcast %84 : vector<2x1x1xf32> to vector<2x16x16xf32>
    %86 = arith.mulf %85, %6 : vector<2x16x16xf32>
    %87 = vector.extract_strided_slice %3 {offsets = [0, 0, 10], sizes = [2, 1, 1], strides = [1, 1, 1]} : vector<2x1x24xf32> to vector<2x1x1xf32>
    %88 = vector.broadcast %87 : vector<2x1x1xf32> to vector<2x16x16xf32>
    %89 = arith.mulf %88, %1 : vector<2x16x16xf32>
    %90 = arith.addf %86, %89 : vector<2x16x16xf32>
    %91 = vector.extract_strided_slice %3 {offsets = [0, 0, 11], sizes = [2, 1, 1], strides = [1, 1, 1]} : vector<2x1x24xf32> to vector<2x1x1xf32>
    %92 = vector.broadcast %91 : vector<2x1x1xf32> to vector<2x16x16xf32>
    %93 = arith.mulf %92, %9 : vector<2x16x16xf32>
    %94 = arith.addf %90, %93 : vector<2x16x16xf32>
    %95 = arith.addf %83, %94 : vector<2x16x16xf32>
    %96 = vector.extract_strided_slice %3 {offsets = [0, 0, 12], sizes = [2, 1, 1], strides = [1, 1, 1]} : vector<2x1x24xf32> to vector<2x1x1xf32>
    %97 = vector.broadcast %96 : vector<2x1x1xf32> to vector<2x16x16xf32>
    %98 = arith.mulf %97, %6 : vector<2x16x16xf32>
    %99 = vector.extract_strided_slice %3 {offsets = [0, 0, 13], sizes = [2, 1, 1], strides = [1, 1, 1]} : vector<2x1x24xf32> to vector<2x1x1xf32>
    %100 = vector.broadcast %99 : vector<2x1x1xf32> to vector<2x16x16xf32>
    %101 = arith.mulf %100, %1 : vector<2x16x16xf32>
    %102 = arith.addf %98, %101 : vector<2x16x16xf32>
    %103 = vector.extract_strided_slice %3 {offsets = [0, 0, 14], sizes = [2, 1, 1], strides = [1, 1, 1]} : vector<2x1x24xf32> to vector<2x1x1xf32>
    %104 = vector.broadcast %103 : vector<2x1x1xf32> to vector<2x16x16xf32>
    %105 = arith.mulf %104, %9 : vector<2x16x16xf32>
    %106 = arith.addf %102, %105 : vector<2x16x16xf32>
    %107 = vector.extract_strided_slice %106 {offsets = [0, 1, 0], sizes = [2, 15, 16], strides = [1, 1, 1]} : vector<2x16x16xf32> to vector<2x15x16xf32>
    %108 = vector.extract_strided_slice %106 {offsets = [0, 14, 0], sizes = [2, 1, 16], strides = [1, 1, 1]} : vector<2x16x16xf32> to vector<2x1x16xf32>
    %109 = tpu.concatenate %107, %108 in 1 : vector<2x15x16xf32>, vector<2x1x16xf32> -> vector<2x16x16xf32>
    %110 = arith.addf %95, %109 : vector<2x16x16xf32>
    %111 = vector.extract_strided_slice %3 {offsets = [0, 0, 21], sizes = [2, 1, 1], strides = [1, 1, 1]} : vector<2x1x24xf32> to vector<2x1x1xf32>
    %112 = vector.broadcast %111 : vector<2x1x1xf32> to vector<2x16x16xf32>
    %113 = arith.mulf %112, %110 : vector<2x16x16xf32>
    %114 = arith.addf %69, %113 : vector<2x16x16xf32>
    %115 = vector.extract_strided_slice %3 {offsets = [0, 0, 23], sizes = [2, 1, 1], strides = [1, 1, 1]} : vector<2x1x24xf32> to vector<2x1x1xf32>
    %116 = vector.broadcast %115 : vector<2x1x1xf32> to vector<2x16x16xf32>
    %117 = arith.subf %114, %116 : vector<2x16x16xf32>
    %118 = vector.extract_strided_slice %3 {offsets = [0, 0, 22], sizes = [2, 1, 1], strides = [1, 1, 1]} : vector<2x1x24xf32> to vector<2x1x1xf32>
    %119 = vector.broadcast %118 : vector<2x1x1xf32> to vector<2x16x16xf32>
    %120 = arith.mulf %119, %1 : vector<2x16x16xf32>
    %121 = arith.addf %117, %120 : vector<2x16x16xf32>
    %c0_10 = arith.constant 0 : index
    %c0_11 = arith.constant 0 : index
    %c0_12 = arith.constant 0 : index
    %c0_13 = arith.constant 0 : index
    %122 = vector.load %arg4[%c0_10, %c0_11, %c0_12, %c0_13] : memref<1x2x16x16xf32, #tpu.memory_space<vmem>>, vector<1x2x16x16xf32>
    %123 = vector.shape_cast %122 : vector<1x2x16x16xf32> to vector<2x16x16xf32>
    %124 = vector.shape_cast %121 : vector<2x16x16xf32> to vector<1x2x16x16xf32>
    tpu.vector_store %arg4[%c0_10, %c0_11, %c0_12, %c0_13], %124 {strides = array<i32>} : memref<1x2x16x16xf32, #tpu.memory_space<vmem>>, vector<1x2x16x16xf32>,
    return
  }
  func.func @transform_0(%arg0: i32, %arg1: i32) -> (i32, i32, i32, i32) {
    %c0_i32 = arith.constant 0 : i32
    %c0_i32_0 = arith.constant 0 : i32
    %c0_i32_1 = arith.constant 0 : i32
    return %arg0, %arg1, %c0_i32, %c0_i32_0 : i32, i32, i32, i32
  }
  func.func @transform_1(%arg0: i32, %arg1: i32) -> (i32, i32, i32, i32) {
    %c0_i32 = arith.constant 0 : i32
    %c0_i32_0 = arith.constant 0 : i32
    %c0_i32_1 = arith.constant 0 : i32
    return %arg0, %arg1, %c0_i32, %c0_i32_0 : i32, i32, i32, i32
  }
  func.func @transform_2(%arg0: i32, %arg1: i32) -> (i32, i32, i32, i32) {
    %c0_i32 = arith.constant 0 : i32
    %c0_i32_0 = arith.constant 0 : i32
    %c0_i32_1 = arith.constant 0 : i32
    return %arg0, %arg1, %c0_i32, %c0_i32_0 : i32, i32, i32, i32
  }
}

</mosaic_0001>

<llo_original>
// kernel: ms_attention.2
$region0: #{ms_attention.2}
  #allocation0 [shape = 'u32[]', space=smem, size = 0x4, offset = 0x4, fixed_abs, tag = 'smem constant byte address 0x4 - core index']
  #allocation1 [shape = 'u32[144,128]{1,0:T(1,128)}', space=vmem, size = 0x12000, scoped, tag = 'internal scratch']
  %s0 = inlined_call_operand.vmem [shape: f32[2,8,16,16], index: 0, kind: input, shape index: {}]
  %s1 = inlined_call_operand.vmem [shape: f32[2,8,1,4], index: 1, kind: output, shape index: {}]
  %s2 = sld [smem:[#allocation0]]
  $region37: #{ms_attention.2} parent=0
    _
  %s4 = ssub.s32 1, %s2
  %s5 = scalar_select 0, %s4, %s2
  loop: start=0, step=1, limit=10
  $region2: #{ms_attention.2} parent=0 // loop_pre_header
    _
  $region3: #{ms_attention.2} parent=0 // loop_header
    %s7 = sphi 0, %s11
    %p8 = scmp.ge.s32.totalorder %s7, 10
    %s14 = sphi 0, %s26
    %s15 = sphi 0, %s22
    %s16 = sphi 0, %s14
    %s17 = sphi 0, %s15
    %s18 = sphi 0, %s16
    %s19 = sphi 0, %s17
    %s31 = sphi 0, %s33
    %s34 = sphi 0, %s31
    %s35 = sphi 0, %s34
    %s51 = sphi 0, %s35
    %s59 = sphi 0, %s61
    %s62 = sphi 0, %s59
    %s63 = sphi 0, %s62
    %s79 = sphi 0, %s63
  $region4: #{ms_attention.2} parent=0 // loop_header_branch
    %10 = sbr.rel (%p8) target = $region8
  $region5: #{ms_attention.2} parent=0 // loop_body
    %s12 = ssub.s32 %s7, 1
    %s13 = ssub.s32 %s7, 2
    %s20 = sadd.s32 1, %s15
    %p21 = scmp.ge.s32.totalorder %s20, 4
    %s22 = scalar_select %p21, 0, %s20
    %s23 = sadd.s32 1, %s14
    %s24 = scalar_select %p21, %s23, %s14
    %p25 = scmp.ge.s32.totalorder %s24, 2
    %s26 = scalar_select %p25, 0, %s24
    %s27 = ssub.s32 %s14, %s26
    %s28 = ssub.s32 %s15, %s22
    %s29 = sor.u32 %s27, %s28
    %p30 = scmp.eq.s32.totalorder %s29, 0
    %s32 = sadd.s32 %s31, 1
    %s33 = scalar_select %p30, %s31, %s32
    %p36 = pneg %p30
    %p37 = scmp.eq.s32.totalorder %s7, 7
    %p38 = por %p36, %p37
    %p39 = scmp.ne.s32.totalorder %s31, %s34
    %p40 = scmp.eq.s32.totalorder %s7, 0
    %p41 = por %p39, %p40
    %p42 = scmp.ne.s32.totalorder %s31, %s34
    %p43 = scmp.eq.s32.totalorder %s12, 7
    %p44 = por %p42, %p43
    %p45 = scmp.ne.s32.totalorder %s34, %s35
    %p46 = scmp.eq.s32.totalorder %s12, 0
    %p47 = por %p45, %p46
    %p48 = scmp.ne.s32.totalorder %s34, %s35
    %p49 = scmp.eq.s32.totalorder %s13, 7
    %p50 = por %p48, %p49
    %p52 = scmp.ne.s32.totalorder %s35, %s51
    %p53 = scmp.eq.s32.totalorder %s13, 0
    %p54 = por %p52, %p53
    %s55 = ssub.s32 %s14, %s26
    %s56 = ssub.s32 %s15, %s22
    %s57 = sor.u32 %s55, %s56
    %p58 = scmp.eq.s32.totalorder %s57, 0
    %s60 = sadd.s32 %s59, 1
    %s61 = scalar_select %p58, %s59, %s60
    %p64 = pneg %p58
    %p65 = scmp.eq.s32.totalorder %s7, 7
    %p66 = por %p64, %p65
    %p67 = scmp.ne.s32.totalorder %s59, %s62
    %p68 = scmp.eq.s32.totalorder %s7, 0
    %p69 = por %p67, %p68
    %p70 = scmp.ne.s32.totalorder %s59, %s62
    %p71 = scmp.eq.s32.totalorder %s12, 7
    %p72 = por %p70, %p71
    %p73 = scmp.ne.s32.totalorder %s62, %s63
    %p74 = scmp.eq.s32.totalorder %s12, 0
    %p75 = por %p73, %p74
    %p76 = scmp.ne.s32.totalorder %s62, %s63
    %p77 = scmp.eq.s32.totalorder %s13, 7
    %p78 = por %p76, %p77
    %p80 = scmp.ne.s32.totalorder %s63, %s79
    %p81 = scmp.eq.s32.totalorder %s13, 0
    %p82 = por %p80, %p81
    %p83 = scmp.le.s32.totalorder 1, %s7
    %p84 = scmp.lt.s32.totalorder %s7, 9
    %p85 = pnand %p83, %p84
    %p86 = pneg %p85
    // Predicated region
    $region9: #{ms_attention.2} parent=5 // pred_check
      _
    $region10: #{ms_attention.2} parent=5 // pred_check_branch
      %88 = sbr.rel (%p85) target = $region12
    $region11: #{ms_attention.2} parent=5 // pred_region
      %s89 = ssub.s32 %s7, 1
    $region12: #{ms_attention.2} parent=5 // pred_fallthru
      _
    %p90 = scmp.lt.s32.totalorder %s7, 8
    // Predicated region
    $region13: #{ms_attention.2} parent=5 // pred_check
      %p91 = pneg %p90
    $region14: #{ms_attention.2} parent=5 // pred_check_branch
      %93 = sbr.rel (%p91) target = $region16
    $region15: #{ms_attention.2} parent=5 // pred_region
      // Predicated region
      $region17: #{ms_attention.2} parent=15 // pred_check
        %p94 = pneg %p41
      $region18: #{ms_attention.2} parent=15 // pred_check_branch
        %96 = sbr.rel (%p94) target = $region20
      $region19: #{ms_attention.2} parent=15 // pred_region
        %s97 = smul.u32 2, %s15
        %p98 = scmp.lt.s32.totalorder %s14, 1
        %s99 = scalar_select %p98, %s14, 1
        %p100 = scmp.lt.s32.totalorder %s97, 7
        %s101 = scalar_select %p100, %s97, 7
        %s102 = smul.addr %s101, 2
        %s103 = smul.addr %s99, 16
        %s104 = sadd.s32 %s102, %s103
        %s105 = smul.addr %s104, 8
        %s106 = scalar_lea.vmem %s0, %s105
        %s107 = smul.u32 2, %s15
      $region20: #{ms_attention.2} parent=15 // pred_fallthru
        _
    $region16: #{ms_attention.2} parent=5 // pred_fallthru
      _
    %p108 = scmp.le.s32.totalorder 1, %s7
    %p109 = scmp.lt.s32.totalorder %s7, 9
    %p110 = pnand %p108, %p109
    %p111 = pneg %p110
    // Predicated region
    $region21: #{ms_attention.2} parent=5 // pred_check
      _
    $region22: #{ms_attention.2} parent=5 // pred_check_branch
      %113 = sbr.rel (%p110) target = $region24
    $region23: #{ms_attention.2} parent=5 // pred_region
      %s114 = ssub.s32 %s7, 1
      %s115 = smul.u32 2, %s17
      %p116 = scmp.lt.s32.totalorder %s16, 1
      %s117 = scalar_select %p116, %s16, 1
      %p118 = scmp.lt.s32.totalorder %s115, 7
      %s119 = scalar_select %p118, %s115, 7
      %s120 = smul.addr %s119, 2
      %s121 = smul.addr %s117, 16
      %s122 = sadd.s32 %s120, %s121
      %s123 = smul.addr %s122, 8
      %s124 = scalar_lea.vmem %s0, %s123
      %p125 = pneg %p47
      %p126 = pneg %p44
      %p127 = pneg %p75
      %p128 = pneg %p72
      %s129 = smul.u32 2, %s17
      %p130 = scmp.lt.s32.totalorder %s16, 1
      %s131 = scalar_select %p130, %s16, 1
      %p132 = scmp.lt.s32.totalorder %s129, 7
      %s133 = scalar_select %p132, %s129, 7
      %s134 = smul.addr %s131, 8
      %s135 = sadd.s32 %s133, %s134
      %s136 = scalar_lea.vmem %s1, %s135
      %s137 = smul.u32 2, %s17
      %p138 = scmp.lt.s32.totalorder %s16, 1
      %s139 = scalar_select %p138, %s16, 1
      %p140 = scmp.lt.s32.totalorder %s137, 7
      %s141 = scalar_select %p140, %s137, 7
      %s142 = smul.addr %s141, 2
      %s143 = smul.addr %s139, 16
      %s144 = sadd.s32 %s142, %s143
      %s145 = smul.addr %s144, 8
      %s146 = scalar_lea.vmem %s0, %s145
      %s147 = smul.u32 2, %s17
      %s148 = smul.u32 2, %s17
      %p149 = scmp.lt.s32.totalorder %s16, 1
      %s150 = scalar_select %p149, %s16, 1
      %p151 = scmp.lt.s32.totalorder %s148, 7
      %s152 = scalar_select %p151, %s148, 7
      %s153 = smul.addr %s150, 8
      %s154 = sadd.s32 %s152, %s153
      %s155 = scalar_lea.vmem %s1, %s154
      %s156 = smul.u32 2, %s17
      %v157 = vld [vmem:[%s146] sm:$0xff]
      %v158 = vld [vmem:[%s146 + $0x8] sm:$0xff]
      %v159 = vld [vmem:[%s146 + $0x10] sm:$0xff]
      %v160 = vld [vmem:[%s146 + $0x18] sm:$0xff]
      %vm161 = vcmask 130048
      %v162 = vsel %vm161, %v157, 0.0
      %v163 = vsel %vm161, %v158, 0.0
      %v164 = vadd.f32 %v162, %v163
      %v165 = vrot.slane %v164, 4
      %v166 = vadd.f32 %v164, %v165
      %v167 = vrot.slane %v166, 2
      %v168 = vadd.f32 %v166, %v167
      %v169 = vrot.slane %v168, 1
      %v170 = vadd.f32 %v168, %v169
      %v171 = vsel %vm161, %v159, 0.0
      %v172 = vsel %vm161, %v160, 0.0
      %v173 = vadd.f32 %v171, %v172
      %v174 = vrot.slane %v173, 4
      %v175 = vadd.f32 %v173, %v174
      %v176 = vrot.slane %v175, 2
      %v177 = vadd.f32 %v175, %v176
      %v178 = vrot.slane %v177, 1
      %v179 = vadd.f32 %v177, %v178
      %v180 = vrcp.pop 16.0
      %v181 = vmul.f32 %v170, %v180
      %v182 = vmul.f32 %v179, %v180
      %v183 = vsel %vm161, %v181, 0.0
      %184 = vadd.xlane.f32.xlu0 %v183
      %v185 = vpop.xlane.xlu0 %184
      %v186 = vsel %vm161, %v182, 0.0
      %187 = vadd.xlane.f32.xlu0 %v186
      %v188 = vpop.xlane.xlu0 %187
      %v189 = vmul.f32 %v185, %v180
      %v190 = vmul.f32 %v188, %v180
      %193 = vrot.lane.b32.xlu0 %v181, 127
      %v194 = vpop.permute.xlu0 %193
      %195 = vrot.lane.b32.xlu0 %v182, 127
      %v196 = vpop.permute.xlu0 %195
      %199 = vrot.lane.b32.xlu0 %v181, 1
      %v200 = vpop.permute.xlu0 %199
      %201 = vrot.lane.b32.xlu0 %v182, 1
      %v202 = vpop.permute.xlu0 %201
      %vm205 = vcmask 7168
      %v206 = vsel %vm205, %v194, %v200
      %v207 = vsel %vm205, %v196, %v202
      %vm208 = vcmask 122880
      %v209 = vsel %vm208, %v206, 0.0
      %210 = vadd.xlane.f32.xlu0 %v209
      %v211 = vpop.xlane.xlu0 %210
      %v212 = vsel %vm208, %v207, 0.0
      %213 = vadd.xlane.f32.xlu0 %v212
      %v214 = vpop.xlane.xlu0 %213
      %v215 = vmul.f32 %v211, %v180
      %v216 = vmul.f32 %v214, %v180
      %vm217 = vcmask 121856
      %v218 = vsel %vm217, %v194, %v200
      %v219 = vsel %vm217, %v196, %v202
      %v220 = vsel %vm208, %v218, 0.0
      %221 = vadd.xlane.f32.xlu0 %v220
      %v222 = vpop.xlane.xlu0 %221
      %v223 = vsel %vm208, %v219, 0.0
      %224 = vadd.xlane.f32.xlu0 %v223
      %v225 = vpop.xlane.xlu0 %224
      %v226 = vmul.f32 %v222, %v180
      %v227 = vmul.f32 %v225, %v180
      %v228 = vsel %vm205, %v189, %v215
      %v229 = vsel %vm205, %v190, %v216
      %vm230 = vcmask 15360
      %v231 = vsel %vm230, %v228, %v189
      %v232 = vsel %vm230, %v229, %v190
      %vm233 = vcmask 23552
      %v234 = vsel %vm233, %v231, %v226
      %v235 = vsel %vm233, %v232, %v227
      %vm236 = vcmask 24576
      %237 = vst.msk [vmem:[%s155] sm:$0x1] %vm236, %v234
      %238 = vst.msk [vmem:[%s155 + $0x1] sm:$0x1] %vm236, %v235
      %s239 = smul.u32 2, %s17
      %p240 = scmp.lt.s32.totalorder %s16, 1
      %s241 = scalar_select %p240, %s16, 1
      %p242 = scmp.lt.s32.totalorder %s239, 7
      %s243 = scalar_select %p242, %s239, 7
      %s244 = smul.addr %s241, 8
      %s245 = sadd.s32 %s243, %s244
      %s246 = scalar_lea.vmem %s1, %s245
      // Predicated region
      $region25: #{ms_attention.2} parent=23 // pred_check
        %p247 = pneg %p72
      $region26: #{ms_attention.2} parent=23 // pred_check_branch
        %249 = sbr.rel (%p247) target = $region28
      $region27: #{ms_attention.2} parent=23 // pred_region
        %s250 = smul.u32 2, %s17
      $region28: #{ms_attention.2} parent=23 // pred_fallthru
        _
    $region24: #{ms_attention.2} parent=5 // pred_fallthru
      _
    %p251 = scmp.le.s32.totalorder 2, %s7
    // Predicated region
    $region29: #{ms_attention.2} parent=5 // pred_check
      %p252 = pneg %p251
    $region30: #{ms_attention.2} parent=5 // pred_check_branch
      %254 = sbr.rel (%p252) target = $region32
    $region31: #{ms_attention.2} parent=5 // pred_region
      %s255 = ssub.s32 %s7, 2
      // Predicated region
      $region33: #{ms_attention.2} parent=31 // pred_check
        %p256 = pneg %p78
      $region34: #{ms_attention.2} parent=31 // pred_check_branch
        %258 = sbr.rel (%p256) target = $region36
      $region35: #{ms_attention.2} parent=31 // pred_region
        %s259 = smul.u32 2, %s19
        %p260 = scmp.lt.s32.totalorder %s18, 1
        %s261 = scalar_select %p260, %s18, 1
        %p262 = scmp.lt.s32.totalorder %s259, 7
        %s263 = scalar_select %p262, %s259, 7
        %s264 = smul.addr %s261, 8
        %s265 = sadd.s32 %s263, %s264
        %s266 = scalar_lea.vmem %s1, %s265
      $region36: #{ms_attention.2} parent=31 // pred_fallthru
        _
    $region32: #{ms_attention.2} parent=5 // pred_fallthru
      _
  $region6: #{ms_attention.2} parent=0 // loop_footer
    %s11 = sadd.s32 1, %s7
  $region7: #{ms_attention.2} parent=0 // loop_footer_branch
    %6 = sbr.rel target = $region3
  $region8: #{ms_attention.2} parent=0 // loop_exit
    _

// kernel: ms_attention.3
$region0: #{ms_attention.3}
  #allocation0 [shape = 'u32[]', space=smem, size = 0x4, offset = 0x4, fixed_abs, tag = 'smem constant byte address 0x4 - core index']
  #allocation1 [shape = 'u32[144,128]{1,0:T(1,128)}', space=vmem, size = 0x12000, scoped, tag = 'internal scratch']
  %s0 = inlined_call_operand.vmem [shape: f32[2,8,16,16], index: 0, kind: input, shape index: {}]
  %s1 = inlined_call_operand.vmem [shape: f32[2,8,1,24], index: 1, kind: input, shape index: {}]
  %s2 = inlined_call_operand.hbm [shape: f32[2,8,16,16], index: 2, kind: output, shape index: {}]
  %s3 = sld [smem:[#allocation0]]
  $region41: #{ms_attention.3} parent=0
    _
  %s5 = ssub.s32 1, %s3
  %s6 = scalar_select 0, %s5, %s3
  $region1: #{ms_attention.3} parent=0
    #allocation2 [shape = 'u8[32768]{0}', space=vmem, size = 0x8000, scoped, tag = 'output window, operand 0']
    #allocation3 [shape = 's32[2]{0}', space=sflag, size = 0x8, scoped, tag = 'scoped memory for ms_attention.3']
    %7 = vsyncpa [#allocation3], 0
    %s8 = scalar_lea.sflag [#allocation3], 1
    %9 = vsyncpa %s8, 0
    loop: start=0, step=1, limit=10
    $region2: #{ms_attention.3} parent=1 // loop_pre_header
      _
    $region3: #{ms_attention.3} parent=1 // loop_header
      %s11 = sphi 0, %s15
      %p12 = scmp.ge.s32.totalorder %s11, 10
      %s18 = sphi 0, %s30
      %s19 = sphi 0, %s26
      %s20 = sphi 0, %s18
      %s21 = sphi 0, %s19
      %s22 = sphi 0, %s20
      %s23 = sphi 0, %s21
      %s35 = sphi 0, %s37
      %s38 = sphi 0, %s35
      %s39 = sphi 0, %s38
      %s55 = sphi 0, %s39
      %s63 = sphi 0, %s65
      %s66 = sphi 0, %s63
      %s67 = sphi 0, %s66
      %s83 = sphi 0, %s67
      %s91 = sphi 0, %s93
      %s94 = sphi 0, %s91
      %s95 = sphi 0, %s94
      %s111 = sphi 0, %s95
    $region4: #{ms_attention.3} parent=1 // loop_header_branch
      %14 = sbr.rel (%p12) target = $region8
    $region5: #{ms_attention.3} parent=1 // loop_body
      %s16 = ssub.s32 %s11, 1
      %s17 = ssub.s32 %s11, 2
      %s24 = sadd.s32 1, %s19
      %p25 = scmp.ge.s32.totalorder %s24, 4
      %s26 = scalar_select %p25, 0, %s24
      %s27 = sadd.s32 1, %s18
      %s28 = scalar_select %p25, %s27, %s18
      %p29 = scmp.ge.s32.totalorder %s28, 2
      %s30 = scalar_select %p29, 0, %s28
      %s31 = ssub.s32 %s18, %s30
      %s32 = ssub.s32 %s19, %s26
      %s33 = sor.u32 %s31, %s32
      %p34 = scmp.eq.s32.totalorder %s33, 0
      %s36 = sadd.s32 %s35, 1
      %s37 = scalar_select %p34, %s35, %s36
      %p40 = pneg %p34
      %p41 = scmp.eq.s32.totalorder %s11, 7
      %p42 = por %p40, %p41
      %p43 = scmp.ne.s32.totalorder %s35, %s38
      %p44 = scmp.eq.s32.totalorder %s11, 0
      %p45 = por %p43, %p44
      %p46 = scmp.ne.s32.totalorder %s35, %s38
      %p47 = scmp.eq.s32.totalorder %s16, 7
      %p48 = por %p46, %p47
      %p49 = scmp.ne.s32.totalorder %s38, %s39
      %p50 = scmp.eq.s32.totalorder %s16, 0
      %p51 = por %p49, %p50
      %p52 = scmp.ne.s32.totalorder %s38, %s39
      %p53 = scmp.eq.s32.totalorder %s17, 7
      %p54 = por %p52, %p53
      %p56 = scmp.ne.s32.totalorder %s39, %s55
      %p57 = scmp.eq.s32.totalorder %s17, 0
      %p58 = por %p56, %p57
      %s59 = ssub.s32 %s18, %s30
      %s60 = ssub.s32 %s19, %s26
      %s61 = sor.u32 %s59, %s60
      %p62 = scmp.eq.s32.totalorder %s61, 0
      %s64 = sadd.s32 %s63, 1
      %s65 = scalar_select %p62, %s63, %s64
      %p68 = pneg %p62
      %p69 = scmp.eq.s32.totalorder %s11, 7
      %p70 = por %p68, %p69
      %p71 = scmp.ne.s32.totalorder %s63, %s66
      %p72 = scmp.eq.s32.totalorder %s11, 0
      %p73 = por %p71, %p72
      %p74 = scmp.ne.s32.totalorder %s63, %s66
      %p75 = scmp.eq.s32.totalorder %s16, 7
      %p76 = por %p74, %p75
      %p77 = scmp.ne.s32.totalorder %s66, %s67
      %p78 = scmp.eq.s32.totalorder %s16, 0
      %p79 = por %p77, %p78
      %p80 = scmp.ne.s32.totalorder %s66, %s67
      %p81 = scmp.eq.s32.totalorder %s17, 7
      %p82 = por %p80, %p81
      %p84 = scmp.ne.s32.totalorder %s67, %s83
      %p85 = scmp.eq.s32.totalorder %s17, 0
      %p86 = por %p84, %p85
      %s87 = ssub.s32 %s18, %s30
      %s88 = ssub.s32 %s19, %s26
      %s89 = sor.u32 %s87, %s88
      %p90 = scmp.eq.s32.totalorder %s89, 0
      %s92 = sadd.s32 %s91, 1
      %s93 = scalar_select %p90, %s91, %s92
      %p96 = pneg %p90
      %p97 = scmp.eq.s32.totalorder %s11, 7
      %p98 = por %p96, %p97
      %p99 = scmp.ne.s32.totalorder %s91, %s94
      %p100 = scmp.eq.s32.totalorder %s11, 0
      %p101 = por %p99, %p100
      %p102 = scmp.ne.s32.totalorder %s91, %s94
      %p103 = scmp.eq.s32.totalorder %s16, 7
      %p104 = por %p102, %p103
      %p105 = scmp.ne.s32.totalorder %s94, %s95
      %p106 = scmp.eq.s32.totalorder %s16, 0
      %p107 = por %p105, %p106
      %p108 = scmp.ne.s32.totalorder %s94, %s95
      %p109 = scmp.eq.s32.totalorder %s17, 7
      %p110 = por %p108, %p109
      %p112 = scmp.ne.s32.totalorder %s95, %s111
      %p113 = scmp.eq.s32.totalorder %s17, 0
      %p114 = por %p112, %p113
      %p115 = scmp.le.s32.totalorder 1, %s11
      %p116 = scmp.lt.s32.totalorder %s11, 9
      %p117 = pnand %p115, %p116
      %p118 = pneg %p117
      // Predicated region
      $region9: #{ms_attention.3} parent=5 // pred_check
        _
      $region10: #{ms_attention.3} parent=5 // pred_check_branch
        %120 = sbr.rel (%p117) target = $region12
      $region11: #{ms_attention.3} parent=5 // pred_region
        %s121 = ssub.s32 %s11, 1
      $region12: #{ms_attention.3} parent=5 // pred_fallthru
        _
      %p122 = scmp.lt.s32.totalorder %s11, 8
      // Predicated region
      $region13: #{ms_attention.3} parent=5 // pred_check
        %p123 = pneg %p122
      $region14: #{ms_attention.3} parent=5 // pred_check_branch
        %125 = sbr.rel (%p123) target = $region16
      $region15: #{ms_attention.3} parent=5 // pred_region
        // Predicated region
        $region17: #{ms_attention.3} parent=15 // pred_check
          %p126 = pneg %p45
        $region18: #{ms_attention.3} parent=15 // pred_check_branch
          %128 = sbr.rel (%p126) target = $region20
        $region19: #{ms_attention.3} parent=15 // pred_region
          %s129 = smul.u32 2, %s19
          %p130 = scmp.lt.s32.totalorder %s18, 1
          %s131 = scalar_select %p130, %s18, 1
          %p132 = scmp.lt.s32.totalorder %s129, 7
          %s133 = scalar_select %p132, %s129, 7
          %s134 = smul.addr %s133, 2
          %s135 = smul.addr %s131, 16
          %s136 = sadd.s32 %s134, %s135
          %s137 = smul.addr %s136, 8
          %s138 = scalar_lea.vmem %s0, %s137
          %s139 = smul.u32 2, %s19
        $region20: #{ms_attention.3} parent=15 // pred_fallthru
          _
        // Predicated region
        $region21: #{ms_attention.3} parent=15 // pred_check
          %p140 = pneg %p73
        $region22: #{ms_attention.3} parent=15 // pred_check_branch
          %142 = sbr.rel (%p140) target = $region24
        $region23: #{ms_attention.3} parent=15 // pred_region
          %s143 = smul.u32 2, %s19
          %p144 = scmp.lt.s32.totalorder %s18, 1
          %s145 = scalar_select %p144, %s18, 1
          %p146 = scmp.lt.s32.totalorder %s143, 7
          %s147 = scalar_select %p146, %s143, 7
          %s148 = smul.addr %s145, 8
          %s149 = sadd.s32 %s147, %s148
          %s150 = scalar_lea.vmem %s1, %s149
          %s151 = smul.u32 2, %s19
        $region24: #{ms_attention.3} parent=15 // pred_fallthru
          _
      $region16: #{ms_attention.3} parent=5 // pred_fallthru
        _
      %p152 = scmp.le.s32.totalorder 1, %s11
      %p153 = scmp.lt.s32.totalorder %s11, 9
      %p154 = pnand %p152, %p153
      %p155 = pneg %p154
      // Predicated region
      $region25: #{ms_attention.3} parent=5 // pred_check
        _
      $region26: #{ms_attention.3} parent=5 // pred_check_branch
        %157 = sbr.rel (%p154) target = $region28
      $region27: #{ms_attention.3} parent=5 // pred_region
        %s158 = ssub.s32 %s11, 1
        %s159 = smul.u32 2, %s21
        %p160 = scmp.lt.s32.totalorder %s20, 1
        %s161 = scalar_select %p160, %s20, 1
        %p162 = scmp.lt.s32.totalorder %s159, 7
        %s163 = scalar_select %p162, %s159, 7
        %s164 = smul.addr %s163, 2
        %s165 = smul.addr %s161, 16
        %s166 = sadd.s32 %s164, %s165
        %s167 = smul.addr %s166, 8
        %s168 = scalar_lea.vmem %s0, %s167
        %p169 = pneg %p51
        %p170 = pneg %p48
        %s171 = smul.u32 2, %s21
        %p172 = scmp.lt.s32.totalorder %s20, 1
        %s173 = scalar_select %p172, %s20, 1
        %p174 = scmp.lt.s32.totalorder %s171, 7
        %s175 = scalar_select %p174, %s171, 7
        %s176 = smul.addr %s173, 8
        %s177 = sadd.s32 %s175, %s176
        %s178 = scalar_lea.vmem %s1, %s177
        %p179 = pneg %p79
        %p180 = pneg %p76
        %p181 = pneg %p107
        %p182 = pneg %p104
        %s183 = sand.u32 %s94, 1
        %s184 = scalar_lea.sflag [#allocation3], %s183
        %s185 = sand.u32 %s94, 1
        %s186 = smul.addr %s185, 32
        %s187 = scalar_lea.vmem [#allocation2], %s186
        %s188 = smul.u32 2, %s21
        %p189 = scmp.lt.s32.totalorder %s20, 1
        %s190 = scalar_select %p189, %s20, 1
        %p191 = scmp.lt.s32.totalorder %s188, 7
        %s192 = scalar_select %p191, %s188, 7
        %s193 = smul.addr %s192, 2
        %s194 = smul.addr %s190, 16
        %s195 = sadd.s32 %s193, %s194
        %s196 = smul.addr %s195, 8
        %s197 = scalar_lea.vmem %s0, %s196
        %s198 = smul.u32 2, %s21
        %s199 = smul.u32 2, %s21
        %p200 = scmp.lt.s32.totalorder %s20, 1
        %s201 = scalar_select %p200, %s20, 1
        %p202 = scmp.lt.s32.totalorder %s199, 7
        %s203 = scalar_select %p202, %s199, 7
        %s204 = smul.addr %s201, 8
        %s205 = sadd.s32 %s203, %s204
        %s206 = scalar_lea.vmem %s1, %s205
        %s207 = smul.u32 2, %s21
        %s208 = smul.u32 2, %s21
        %v209 = vld [vmem:[%s197] sm:$0xff]
        %v210 = vld [vmem:[%s197 + $0x8] sm:$0xff]
        %v211 = vld [vmem:[%s197 + $0x10] sm:$0xff]
        %v212 = vld [vmem:[%s197 + $0x18] sm:$0xff]
        %v213 = vld [vmem:[%s206] sm:$0x1]
        %v214 = vld [vmem:[%s206 + $0x1] sm:$0x1]
        %219 = vrot.lane.b32.xlu0 %v209, 127
        %v220 = vpop.permute.xlu0 %219
        %221 = vrot.lane.b32.xlu0 %v210, 127
        %v222 = vpop.permute.xlu0 %221
        %223 = vrot.lane.b32.xlu0 %v211, 127
        %v224 = vpop.permute.xlu0 %223
        %225 = vrot.lane.b32.xlu0 %v212, 127
        %v226 = vpop.permute.xlu0 %225
        %231 = vrot.lane.b32.xlu0 %v209, 1
        %v232 = vpop.permute.xlu0 %231
        %233 = vrot.lane.b32.xlu0 %v210, 1
        %v234 = vpop.permute.xlu0 %233
        %235 = vrot.lane.b32.xlu0 %v211, 1
        %v236 = vpop.permute.xlu0 %235
        %237 = vrot.lane.b32.xlu0 %v212, 1
        %v238 = vpop.permute.xlu0 %237
        %vm243 = vcmask 7168
        %v244 = vsel %vm243, %v220, %v232
        %v245 = vsel %vm243, %v222, %v234
        %v246 = vsel %vm243, %v224, %v236
        %v247 = vsel %vm243, %v226, %v238
        %vm248 = vcmask 121856
        %v249 = vsel %vm248, %v220, %v232
        %v250 = vsel %vm248, %v222, %v234
        %v251 = vsel %vm248, %v224, %v236
        %v252 = vsel %vm248, %v226, %v238
        %v255 = vlaneseq
        %v256 = vshrl.u32 %v255, 7
        %v257 = vsub.s32 0, %v256
        %v258 = vrot.slane %v213, %v257
        %v259 = vlaneseq
        %v260 = vshrl.u32 %v259, 7
        %v261 = vsub.s32 0, %v260
        %v262 = vrot.slane %v214, %v261
        %263 = vset.pattern.permute.xlu0 0
        %264 = vperm.xlu0 %263, %v258
        %v265 = vpop.permute.xlu0 %264
        %267 = vset.pattern.permute.xlu0 0
        %268 = vperm.xlu0 %267, %v262
        %v269 = vpop.permute.xlu0 %268
        %v271 = vmul.f32 %v265, %v244
        %v272 = vmul.f32 %v265, %v245
        %v273 = vmul.f32 %v269, %v246
        %v274 = vmul.f32 %v269, %v247
        %275 = vset.pattern.permute.xlu0 1
        %276 = vperm.xlu0 %275, %v258
        %v277 = vpop.permute.xlu0 %276
        %279 = vset.pattern.permute.xlu0 1
        %280 = vperm.xlu0 %279, %v262
        %v281 = vpop.permute.xlu0 %280
        %v283 = vmul.f32 %v277, %v209
        %v284 = vmul.f32 %v277, %v210
        %v285 = vmul.f32 %v281, %v211
        %v286 = vmul.f32 %v281, %v212
        %v287 = vadd.f32 %v271, %v283
        %v288 = vadd.f32 %v272, %v284
        %v289 = vadd.f32 %v273, %v285
        %v290 = vadd.f32 %v274, %v286
        %291 = vset.pattern.permute.xlu0 2
        %292 = vperm.xlu0 %291, %v258
        %v293 = vpop.permute.xlu0 %292
        %295 = vset.pattern.permute.xlu0 2
        %296 = vperm.xlu0 %295, %v262
        %v297 = vpop.permute.xlu0 %296
        %v299 = vmul.f32 %v293, %v249
        %v300 = vmul.f32 %v293, %v250
        %v301 = vmul.f32 %v297, %v251
        %v302 = vmul.f32 %v297, %v252
        %v303 = vadd.f32 %v287, %v299
        %v304 = vadd.f32 %v288, %v300
        %v305 = vadd.f32 %v289, %v301
        %v306 = vadd.f32 %v290, %v302
        %vm307 = vcmask 130048
        %v308 = vsel %vm307, %v209, 0.0
        %309 = vadd.xlane.f32.xlu0 %v308
        %v310 = vpop.xlane.xlu0 %309
        %v311 = vsel %vm307, %v210, 0.0
        %312 = vadd.xlane.f32.xlu0 %v311
        %v313 = vpop.xlane.xlu0 %312
        %v314 = vsel %vm307, %v211, 0.0
        %315 = vadd.xlane.f32.xlu0 %v314
        %v316 = vpop.xlane.xlu0 %315
        %v317 = vsel %vm307, %v212, 0.0
        %318 = vadd.xlane.f32.xlu0 %v317
        %v319 = vpop.xlane.xlu0 %318
        %v320 = vrcp.pop 16.0
        %v321 = vmul.f32 %v310, %v320
        %v322 = vmul.f32 %v313, %v320
        %v323 = vmul.f32 %v316, %v320
        %v324 = vmul.f32 %v319, %v320
        %325 = vset.pattern.permute.xlu0 15
        %326 = vperm.xlu0 %325, %v258
        %v327 = vpop.permute.xlu0 %326
        %329 = vset.pattern.permute.xlu0 15
        %330 = vperm.xlu0 %329, %v262
        %v331 = vpop.permute.xlu0 %330
        %v333 = vmul.f32 %v327, %v303
        %v334 = vmul.f32 %v327, %v304
        %v335 = vmul.f32 %v331, %v305
        %v336 = vmul.f32 %v331, %v306
        %v339 = vmul.f32 %v258, %v321
        %v340 = vmul.f32 %v258, %v322
        %v341 = vmul.f32 %v262, %v323
        %v342 = vmul.f32 %v262, %v324
        %344 = vset.pattern.permute.xlu0 16
        %345 = vperm.xlu0 %344, %v339
        %v346 = vpop.permute.xlu0 %345
        %349 = vset.pattern.permute.xlu0 16
        %350 = vperm.xlu0 %349, %v340
        %v351 = vpop.permute.xlu0 %350
        %354 = vset.pattern.permute.xlu0 16
        %355 = vperm.xlu0 %354, %v341
        %v356 = vpop.permute.xlu0 %355
        %359 = vset.pattern.permute.xlu0 16
        %360 = vperm.xlu0 %359, %v342
        %v361 = vpop.permute.xlu0 %360
        %v363 = vsub.f32 %v333, %v346
        %v364 = vsub.f32 %v334, %v351
        %v365 = vsub.f32 %v335, %v356
        %v366 = vsub.f32 %v336, %v361
        %367 = vset.pattern.permute.xlu0 17
        %368 = vperm.xlu0 %367, %v258
        %v369 = vpop.permute.xlu0 %368
        %371 = vset.pattern.permute.xlu0 17
        %372 = vperm.xlu0 %371, %v262
        %v373 = vpop.permute.xlu0 %372
        %v375 = vmul.f32 %v369, %v209
        %v376 = vmul.f32 %v369, %v210
        %v377 = vmul.f32 %v373, %v211
        %v378 = vmul.f32 %v373, %v212
        %v379 = vadd.f32 %v363, %v375
        %v380 = vadd.f32 %v364, %v376
        %v381 = vadd.f32 %v365, %v377
        %v382 = vadd.f32 %v366, %v378
        %v385 = vrot.slane %v379, 1
        %v386 = vrot.slane %v381, 1
        %vm391 = vcmask 1040384
        %v392 = vrot.slane %v379, 7
        %v393 = vrot.slane %v380, 7
        %v394 = vsel %vm391, %v392, %v393
        %v395 = vrot.slane %v381, 7
        %v396 = vrot.slane %v382, 7
        %v397 = vsel %vm391, %v395, %v396
        %v402 = vsel %vm391, %v385, %v392
        %v403 = vsel %vm391, %v386, %v395
        %404 = vset.pattern.permute.xlu0 3
        %405 = vperm.xlu0 %404, %v258
        %v406 = vpop.permute.xlu0 %405
        %408 = vset.pattern.permute.xlu0 3
        %409 = vperm.xlu0 %408, %v262
        %v410 = vpop.permute.xlu0 %409
        %v412 = vmul.f32 %v406, %v402
        %v413 = vmul.f32 %v406, %v394
        %v414 = vmul.f32 %v410, %v403
        %v415 = vmul.f32 %v410, %v397
        %416 = vset.pattern.permute.xlu0 4
        %417 = vperm.xlu0 %416, %v258
        %v418 = vpop.permute.xlu0 %417
        %420 = vset.pattern.permute.xlu0 4
        %421 = vperm.xlu0 %420, %v262
        %v422 = vpop.permute.xlu0 %421
        %v424 = vmul.f32 %v418, %v379
        %v425 = vmul.f32 %v418, %v380
        %v426 = vmul.f32 %v422, %v381
        %v427 = vmul.f32 %v422, %v382
        %v428 = vadd.f32 %v412, %v424
        %v429 = vadd.f32 %v413, %v425
        %v430 = vadd.f32 %v414, %v426
        %v431 = vadd.f32 %v415, %v427
        %vm432 = vcmask 1046528
        %v433 = vrot.slane %v380, 1
        %v434 = vsel %vm432, %v385, %v433
        %v435 = vrot.slane %v382, 1
        %v436 = vsel %vm432, %v386, %v435
        %v443 = vsel %vm432, %v433, %v393
        %v444 = vsel %vm432, %v435, %v396
        %445 = vset.pattern.permute.xlu0 5
        %446 = vperm.xlu0 %445, %v258
        %v447 = vpop.permute.xlu0 %446
        %449 = vset.pattern.permute.xlu0 5
        %450 = vperm.xlu0 %449, %v262
        %v451 = vpop.permute.xlu0 %450
        %v453 = vmul.f32 %v447, %v434
        %v454 = vmul.f32 %v447, %v443
        %v455 = vmul.f32 %v451, %v436
        %v456 = vmul.f32 %v451, %v444
        %v457 = vadd.f32 %v428, %v453
        %v458 = vadd.f32 %v429, %v454
        %v459 = vadd.f32 %v430, %v455
        %v460 = vadd.f32 %v431, %v456
        %v461 = vsel %vm307, %v379, 0.0
        %v462 = vsel %vm307, %v380, 0.0
        %v463 = vadd.f32 %v461, %v462
        %v464 = vrot.slane %v463, 4
        %v465 = vadd.f32 %v463, %v464
        %v466 = vrot.slane %v465, 2
        %v467 = vadd.f32 %v465, %v466
        %v468 = vrot.slane %v467, 1
        %v469 = vadd.f32 %v467, %v468
        %v470 = vsel %vm307, %v381, 0.0
        %v471 = vsel %vm307, %v382, 0.0
        %v472 = vadd.f32 %v470, %v471
        %v473 = vrot.slane %v472, 4
        %v474 = vadd.f32 %v472, %v473
        %v475 = vrot.slane %v474, 2
        %v476 = vadd.f32 %v474, %v475
        %v477 = vrot.slane %v476, 1
        %v478 = vadd.f32 %v476, %v477
        %v479 = vmul.f32 %v469, %v320
        %v480 = vmul.f32 %v478, %v320
        %481 = vset.pattern.permute.xlu0 18
        %482 = vperm.xlu0 %481, %v258
        %v483 = vpop.permute.xlu0 %482
        %485 = vset.pattern.permute.xlu0 18
        %486 = vperm.xlu0 %485, %v262
        %v487 = vpop.permute.xlu0 %486
        %v489 = vmul.f32 %v483, %v457
        %v490 = vmul.f32 %v483, %v458
        %v491 = vmul.f32 %v487, %v459
        %v492 = vmul.f32 %v487, %v460
        %493 = vset.pattern.permute.xlu0 19
        %494 = vperm.xlu0 %493, %v213
        %v495 = vpop.permute.xlu0 %494
        %v497 = vlaneseq
        %v498 = vshrl.u32 %v497, 7
        %v499 = vsub.s32 0, %v498
        %v500 = vrot.slane %v495, %v499
        %501 = vset.pattern.permute.xlu0 19
        %502 = vperm.xlu0 %501, %v214
        %v503 = vpop.permute.xlu0 %502
        %v505 = vlaneseq
        %v506 = vshrl.u32 %v505, 7
        %v507 = vsub.s32 0, %v506
        %v508 = vrot.slane %v503, %v507
        %v509 = vmul.f32 %v500, %v479
        %v510 = vmul.f32 %v508, %v480
        %v511 = vsub.f32 %v489, %v509
        %v512 = vsub.f32 %v490, %v509
        %v513 = vsub.f32 %v491, %v510
        %v514 = vsub.f32 %v492, %v510
        %515 = vset.pattern.permute.xlu0 20
        %516 = vperm.xlu0 %515, %v258
        %v517 = vpop.permute.xlu0 %516
        %519 = vset.pattern.permute.xlu0 20
        %520 = vperm.xlu0 %519, %v262
        %v521 = vpop.permute.xlu0 %520
        %v523 = vmul.f32 %v517, %v379
        %v524 = vmul.f32 %v517, %v380
        %v525 = vmul.f32 %v521, %v381
        %v526 = vmul.f32 %v521, %v382
        %v527 = vadd.f32 %v511, %v523
        %v528 = vadd.f32 %v512, %v524
        %v529 = vadd.f32 %v513, %v525
        %v530 = vadd.f32 %v514, %v526
        %531 = vset.pattern.permute.xlu0 6
        %532 = vperm.xlu0 %531, %v258
        %v533 = vpop.permute.xlu0 %532
        %535 = vset.pattern.permute.xlu0 6
        %536 = vperm.xlu0 %535, %v262
        %v537 = vpop.permute.xlu0 %536
        %v539 = vmul.f32 %v533, %v244
        %v540 = vmul.f32 %v533, %v245
        %v541 = vmul.f32 %v537, %v246
        %v542 = vmul.f32 %v537, %v247
        %543 = vset.pattern.permute.xlu0 7
        %544 = vperm.xlu0 %543, %v258
        %v545 = vpop.permute.xlu0 %544
        %547 = vset.pattern.permute.xlu0 7
        %548 = vperm.xlu0 %547, %v262
        %v549 = vpop.permute.xlu0 %548
        %v551 = vmul.f32 %v545, %v209
        %v552 = vmul.f32 %v545, %v210
        %v553 = vmul.f32 %v549, %v211
        %v554 = vmul.f32 %v549, %v212
        %v555 = vadd.f32 %v539, %v551
        %v556 = vadd.f32 %v540, %v552
        %v557 = vadd.f32 %v541, %v553
        %v558 = vadd.f32 %v542, %v554
        %559 = vset.pattern.permute.xlu0 8
        %560 = vperm.xlu0 %559, %v258
        %v561 = vpop.permute.xlu0 %560
        %563 = vset.pattern.permute.xlu0 8
        %564 = vperm.xlu0 %563, %v262
        %v565 = vpop.permute.xlu0 %564
        %v567 = vmul.f32 %v561, %v249
        %v568 = vmul.f32 %v561, %v250
        %v569 = vmul.f32 %v565, %v251
        %v570 = vmul.f32 %v565, %v252
        %v571 = vadd.f32 %v555, %v567
        %v572 = vadd.f32 %v556, %v568
        %v573 = vadd.f32 %v557, %v569
        %v574 = vadd.f32 %v558, %v570
        %v577 = vrot.slane %v571, 1
        %v578 = vrot.slane %v573, 1
        %v583 = vrot.slane %v571, 7
        %v584 = vrot.slane %v572, 7
        %v585 = vsel %vm391, %v583, %v584
        %v586 = vrot.slane %v573, 7
        %v587 = vrot.slane %v574, 7
        %v588 = vsel %vm391, %v586, %v587
        %v593 = vsel %vm391, %v577, %v583
        %v594 = vsel %vm391, %v578, %v586
        %595 = vset.pattern.permute.xlu0 9
        %596 = vperm.xlu0 %595, %v258
        %v597 = vpop.permute.xlu0 %596
        %599 = vset.pattern.permute.xlu0 9
        %600 = vperm.xlu0 %599, %v262
        %v601 = vpop.permute.xlu0 %600
        %v603 = vmul.f32 %v597, %v244
        %v604 = vmul.f32 %v597, %v245
        %v605 = vmul.f32 %v601, %v246
        %v606 = vmul.f32 %v601, %v247
        %607 = vset.pattern.permute.xlu0 10
        %608 = vperm.xlu0 %607, %v258
        %v609 = vpop.permute.xlu0 %608
        %611 = vset.pattern.permute.xlu0 10
        %612 = vperm.xlu0 %611, %v262
        %v613 = vpop.permute.xlu0 %612
        %v615 = vmul.f32 %v609, %v209
        %v616 = vmul.f32 %v609, %v210
        %v617 = vmul.f32 %v613, %v211
        %v618 = vmul.f32 %v613, %v212
        %v619 = vadd.f32 %v603, %v615
        %v620 = vadd.f32 %v604, %v616
        %v621 = vadd.f32 %v605, %v617
        %v622 = vadd.f32 %v606, %v618
        %623 = vset.pattern.permute.xlu0 11
        %624 = vperm.xlu0 %623, %v258
        %v625 = vpop.permute.xlu0 %624
        %627 = vset.pattern.permute.xlu0 11
        %628 = vperm.xlu0 %627, %v262
        %v629 = vpop.permute.xlu0 %628
        %v631 = vmul.f32 %v625, %v249
        %v632 = vmul.f32 %v625, %v250
        %v633 = vmul.f32 %v629, %v251
        %v634 = vmul.f32 %v629, %v252
        %v635 = vadd.f32 %v619, %v631
        %v636 = vadd.f32 %v620, %v632
        %v637 = vadd.f32 %v621, %v633
        %v638 = vadd.f32 %v622, %v634
        %v639 = vadd.f32 %v593, %v635
        %v640 = vadd.f32 %v585, %v636
        %v641 = vadd.f32 %v594, %v637
        %v642 = vadd.f32 %v588, %v638
        %643 = vset.pattern.permute.xlu0 12
        %644 = vperm.xlu0 %643, %v258
        %v645 = vpop.permute.xlu0 %644
        %647 = vset.pattern.permute.xlu0 12
        %648 = vperm.xlu0 %647, %v262
        %v649 = vpop.permute.xlu0 %648
        %v651 = vmul.f32 %v645, %v244
        %v652 = vmul.f32 %v645, %v245
        %v653 = vmul.f32 %v649, %v246
        %v654 = vmul.f32 %v649, %v247
        %655 = vset.pattern.permute.xlu0 13
        %656 = vperm.xlu0 %655, %v258
        %v657 = vpop.permute.xlu0 %656
        %659 = vset.pattern.permute.xlu0 13
        %660 = vperm.xlu0 %659, %v262
        %v661 = vpop.permute.xlu0 %660
        %v663 = vmul.f32 %v657, %v209
        %v664 = vmul.f32 %v657, %v210
        %v665 = vmul.f32 %v661, %v211
        %v666 = vmul.f32 %v661, %v212
        %v667 = vadd.f32 %v651, %v663
        %v668 = vadd.f32 %v652, %v664
        %v669 = vadd.f32 %v653, %v665
        %v670 = vadd.f32 %v654, %v666
        %671 = vset.pattern.permute.xlu0 14
        %672 = vperm.xlu0 %671, %v258
        %v673 = vpop.permute.xlu0 %672
        %675 = vset.pattern.permute.xlu0 14
        %676 = vperm.xlu0 %675, %v262
        %v677 = vpop.permute.xlu0 %676
        %v679 = vmul.f32 %v673, %v249
        %v680 = vmul.f32 %v673, %v250
        %v681 = vmul.f32 %v677, %v251
        %v682 = vmul.f32 %v677, %v252
        %v683 = vadd.f32 %v667, %v679
        %v684 = vadd.f32 %v668, %v680
        %v685 = vadd.f32 %v669, %v681
        %v686 = vadd.f32 %v670, %v682
        %v691 = vrot.slane %v683, 1
        %v692 = vrot.slane %v684, 1
        %v693 = vsel %vm432, %v691, %v692
        %v694 = vrot.slane %v685, 1
        %v695 = vrot.slane %v686, 1
        %v696 = vsel %vm432, %v694, %v695
        %v701 = vrot.slane %v684, 7
        %v702 = vrot.slane %v686, 7
        %v705 = vsel %vm432, %v692, %v701
        %v706 = vsel %vm432, %v695, %v702
        %v707 = vadd.f32 %v639, %v693
        %v708 = vadd.f32 %v640, %v705
        %v709 = vadd.f32 %v641, %v696
        %v710 = vadd.f32 %v642, %v706
        %711 = vset.pattern.permute.xlu0 21
        %712 = vperm.xlu0 %711, %v258
        %v713 = vpop.permute.xlu0 %712
        %715 = vset.pattern.permute.xlu0 21
        %716 = vperm.xlu0 %715, %v262
        %v717 = vpop.permute.xlu0 %716
        %v719 = vmul.f32 %v713, %v707
        %v720 = vmul.f32 %v713, %v708
        %v721 = vmul.f32 %v717, %v709
        %v722 = vmul.f32 %v717, %v710
        %v723 = vadd.f32 %v527, %v719
        %v724 = vadd.f32 %v528, %v720
        %v725 = vadd.f32 %v529, %v721
        %v726 = vadd.f32 %v530, %v722
        %727 = vset.pattern.permute.xlu0 23
        %728 = vperm.xlu0 %727, %v258
        %v729 = vpop.permute.xlu0 %728
        %731 = vset.pattern.permute.xlu0 23
        %732 = vperm.xlu0 %731, %v262
        %v733 = vpop.permute.xlu0 %732
        %v735 = vsub.f32 %v723, %v729
        %v736 = vsub.f32 %v724, %v729
        %v737 = vsub.f32 %v725, %v733
        %v738 = vsub.f32 %v726, %v733
        %739 = vset.pattern.permute.xlu0 22
        %740 = vperm.xlu0 %739, %v258
        %v741 = vpop.permute.xlu0 %740
        %743 = vset.pattern.permute.xlu0 22
        %744 = vperm.xlu0 %743, %v262
        %v745 = vpop.permute.xlu0 %744
        %v747 = vmul.f32 %v741, %v209
        %v748 = vmul.f32 %v741, %v210
        %v749 = vmul.f32 %v745, %v211
        %v750 = vmul.f32 %v745, %v212
        %v751 = vadd.f32 %v735, %v747
        %v752 = vadd.f32 %v736, %v748
        %v753 = vadd.f32 %v737, %v749
        %v754 = vadd.f32 %v738, %v750
        %755 = vst.msk [vmem:[%s187] sm:$0xff] %vm307, %v751
        %756 = vst.msk [vmem:[%s187 + $0x8] sm:$0xff] %vm307, %v752
        %757 = vst.msk [vmem:[%s187 + $0x10] sm:$0xff] %vm307, %v753
        %758 = vst.msk [vmem:[%s187 + $0x18] sm:$0xff] %vm307, %v754
        %s759 = sand.u32 %s94, 1
        %s760 = scalar_lea.sflag [#allocation3], %s759
        %s761 = sand.u32 %s94, 1
        %s762 = smul.addr %s761, 32
        %s763 = scalar_lea.vmem [#allocation2], %s762
        // Predicated region
        $region29: #{ms_attention.3} parent=27 // pred_check
          %p764 = pneg %p104
        $region30: #{ms_attention.3} parent=27 // pred_check_branch
          %766 = sbr.rel (%p764) target = $region32
        $region31: #{ms_attention.3} parent=27 // pred_region
          %s767 = smul.u32 2, %s21
          %s769 = ssub.s32 512, 512
          %770 = vsyncadd %s760, %s769
          %s771 = smul.addr %s767, 2
          %s772 = smul.addr %s20, 16
          %s773 = sadd.s32 %s771, %s772
          %s774 = smul.addr %s773, 128
          %s775 = scalar_lea.hbm %s2, %s774
          %s776 = sshll.u32 %s763, 4
          %s777 = int_to_ptr.vmem [resolvable:$true] %s776
          %782 = dma.vmem_to_hbm [thread:$0]  %s777, 512, %s775, %s760, 128, 128, 8
        $region32: #{ms_attention.3} parent=27 // pred_fallthru
          _
      $region28: #{ms_attention.3} parent=5 // pred_fallthru
        _
      %p783 = scmp.le.s32.totalorder 2, %s11
      // Predicated region
      $region33: #{ms_attention.3} parent=5 // pred_check
        %p784 = pneg %p783
      $region34: #{ms_attention.3} parent=5 // pred_check_branch
        %786 = sbr.rel (%p784) target = $region36
      $region35: #{ms_attention.3} parent=5 // pred_region
        %s787 = ssub.s32 %s11, 2
        // Predicated region
        $region37: #{ms_attention.3} parent=35 // pred_check
          %p788 = pneg %p110
        $region38: #{ms_attention.3} parent=35 // pred_check_branch
          %790 = sbr.rel (%p788) target = $region40
        $region39: #{ms_attention.3} parent=35 // pred_region
          %s791 = sand.u32 %s95, 1
          %s792 = scalar_lea.sflag [#allocation3], %s791
          %s793 = sand.u32 %s95, 1
          %s794 = smul.addr %s793, 32
          %s795 = scalar_lea.vmem [#allocation2], %s794
          %796 = dma.done %s792, 512
        $region40: #{ms_attention.3} parent=35 // pred_fallthru
          _
      $region36: #{ms_attention.3} parent=5 // pred_fallthru
        _
    $region6: #{ms_attention.3} parent=1 // loop_footer
      %s15 = sadd.s32 1, %s11
    $region7: #{ms_attention.3} parent=1 // loop_footer_branch
      %10 = sbr.rel target = $region3
    $region8: #{ms_attention.3} parent=1 // loop_exit
      _
    %797 = vsyncpa [#allocation3], 1
    %s798 = scalar_lea.sflag [#allocation3], 1
    %799 = vsyncpa %s798, 1

</llo_original>
